<compile_context>
chip_gen: v7x
topology: tpu7x:2x2x1
jax: 0.10.0
libtpu: 0.0.40
codegen_flags: <defaults>
</compile_context>

<pallas_src>
import jax
import jax.numpy as jnp
from jax.experimental import pallas as pl
from jax.experimental.pallas import tpu as pltpu


def _make_pad_kernel_3d(H, W, pad_top, pad_bottom, pad_left, pad_right, W_out):
    """(Cb, H, W) -> (Cb, H_out, W_out).  Zero only the borders, write the
    interior once.  All pad amounts are static Python ints, so unused border
    stores vanish at trace time."""

    def kernel(x_ref, o_ref):
        cb = o_ref.shape[0]
        dt = o_ref.dtype
        if pad_top > 0:
            o_ref[:, pl.ds(0, pad_top), :] = jnp.zeros((cb, pad_top, W_out), dt)
        if pad_bottom > 0:
            o_ref[:, pl.ds(pad_top + H, pad_bottom), :] = jnp.zeros(
                (cb, pad_bottom, W_out), dt)
        if pad_left > 0:
            o_ref[:, pl.ds(pad_top, H), pl.ds(0, pad_left)] = jnp.zeros(
                (cb, H, pad_left), dt)
        if pad_right > 0:
            o_ref[:, pl.ds(pad_top, H), pl.ds(pad_left + W, pad_right)] = (
                jnp.zeros((cb, H, pad_right), dt))
        # TODO(synk): an in-register row build (concat / dynamic_update_slice
        # into a (cb, H, W_out) zero value) followed by a single full-width
        # store would turn the narrow left/right strip stores into unmasked
        # full-lane stores; kept the proven shifted-store form for robustness.
        o_ref[:, pl.ds(pad_top, H), pl.ds(pad_left, W)] = x_ref[...]

    return kernel


def _make_pad_kernel_flat(HW, top_flat, bottom_flat):
    """Lane-dense path (no W padding): (Cb, H*W) -> (Cb, H_out*W).  H padding
    is just a flat lane offset of pad_top*W, so all stores span the wide,
    lane-dense minor dimension."""

    def kernel(x_ref, o_ref):
        cb = o_ref.shape[0]
        dt = o_ref.dtype
        if top_flat > 0:
            o_ref[:, pl.ds(0, top_flat)] = jnp.zeros((cb, top_flat), dt)
        if bottom_flat > 0:
            o_ref[:, pl.ds(top_flat + HW, bottom_flat)] = jnp.zeros(
                (cb, bottom_flat), dt)
        o_ref[:, pl.ds(top_flat, HW)] = x_ref[...]

    return kernel


def simple_pad(x, pad):
    """Equivalent of torch.nn.functional.pad(x, pad) for 4D NCHW inputs with
    constant-zero padding on the last one or two (W / H,W) dimensions."""
    assert x.ndim == 4, "simple_pad kernel expects a 4D NCHW tensor"
    pad = tuple(int(p) for p in pad)
    assert len(pad) in (2, 4), "only padding of the last one or two dims"
    # TODO(synk): negative padding (cropping), non-constant modes, and padding
    # of the N/C dims are not implemented in the kernel path.
    assert all(p >= 0 for p in pad), "negative padding not supported"

    w_left, w_right = pad[0], pad[1]
    h_top, h_bottom = (pad[2], pad[3]) if len(pad) == 4 else (0, 0)

    N, C, H, W = x.shape
    H_out = H + h_top + h_bottom
    W_out = W + w_left + w_right
    B = N * C
    itemsize = jnp.dtype(x.dtype).itemsize

    in_per_chan = H * W * itemsize
    out_per_chan = H_out * W_out * itemsize
    per_chan = max(in_per_chan, out_per_chan)

    # --- Channel-block size: ~4 MiB tiles so the HBM pipeline is not
    # per-step-overhead bound, while 2x(in+out) double buffers stay inside
    # v7x's scoped VMEM.  Keep >= 8 grid steps (>= 2 for small B) so both
    # v7x TensorCores get work; no divisor requirement (ragged last block is
    # masked by Pallas).
    target_bytes = 4 << 20
    cb = target_bytes // per_chan
    if B >= 16:
        cb = min(cb, B // 8)
    elif B >= 2:
        cb = min(cb, B // 2)
    cb = max(1, min(cb, B))

    # Lane-dense fast path: no W padding -> flatten (H, W).
    use_flat = (w_left == 0 and w_right == 0)
    if use_flat:
        # Flat layout puts the channel block on the sublane axis: it must be a
        # multiple of 8 or the full extent B.
        cb_flat = B if B <= 8 else min(B, max(8, (cb // 8) * 8))
        # VMEM budget guard (double-buffered in+out per TensorCore on v7x).
        if cb_flat * (in_per_chan + out_per_chan) * 2 > (24 << 20):
            use_flat = False  # TODO(synk): block along flattened H*W for huge images
        else:
            cb = cb_flat

    num_blocks = pl.cdiv(B, cb)  # ragged trailing block handled by Pallas masking

    in_tile = cb * in_per_chan
    out_tile = cb * out_per_chan
    # Double-buffered in+out tiles plus headroom; capped so the request stays
    # valid on v7x (64 MiB physical / 32 MiB scoped per TensorCore) while
    # raising v5e's 16 MiB scoped default when needed.
    vmem_bytes = int(min(32 << 20, max(8 << 20, 3 * (in_tile + out_tile))))

    in_bytes = B * H * W * itemsize
    out_bytes = B * H_out * W_out * itemsize
    cparams = pltpu.CompilerParams(
        dimension_semantics=("parallel",),
        vmem_limit_bytes=vmem_bytes,
    )
    cost = pl.CostEstimate(flops=0, transcendentals=0,
                           bytes_accessed=in_bytes + out_bytes)
    # TODO(synk): for very small tiles (tiny images with small B) a
    # pipeline_mode=pl.Buffered(3) on the specs could hide DMA issue latency;
    # unnecessary at the 4 MiB tile target used here.

    if use_flat:
        kernel = _make_pad_kernel_flat(H * W, h_top * W, h_bottom * W)
        out2 = pl.pallas_call(
            kernel,
            out_shape=jax.ShapeDtypeStruct((B, H_out * W), x.dtype),
            grid_spec=pltpu.PrefetchScalarGridSpec(
                num_scalar_prefetch=0,
                grid=(num_blocks,),
                in_specs=[pl.BlockSpec((cb, H * W), lambda i: (i, 0))],
                out_specs=pl.BlockSpec((cb, H_out * W), lambda i: (i, 0)),
            ),
            compiler_params=cparams,
            cost_estimate=cost,
        )(x.reshape(B, H * W))
        return out2.reshape(N, C, H_out, W_out)

    kernel = _make_pad_kernel_3d(H, W, h_top, h_bottom, w_left, w_right, W_out)
    out3 = pl.pallas_call(
        kernel,
        out_shape=jax.ShapeDtypeStruct((B, H_out, W_out), x.dtype),
        grid_spec=pltpu.PrefetchScalarGridSpec(
            num_scalar_prefetch=0,
            grid=(num_blocks,),
            in_specs=[pl.BlockSpec((cb, H, W), lambda i: (i, 0, 0))],
            out_specs=pl.BlockSpec((cb, H_out, W_out), lambda i: (i, 0, 0)),
        ),
        compiler_params=cparams,
        cost_estimate=cost,
    )(x.reshape(B, H, W))
    return out3.reshape(N, C, H_out, W_out)


if __name__ == "__main__":
    key = jax.random.PRNGKey(0)
    x = jax.random.normal(key, (2, 4, 16, 16), dtype=jnp.float32)

    # 1) H+W padding (general path).  F.pad convention: (left, right, top, bottom)
    pad = (1, 2, 3, 4)
    out = jax.block_until_ready(simple_pad(x, pad))
    ref = jnp.pad(x, ((0, 0), (0, 0), (pad[2], pad[3]), (pad[0], pad[1])))
    assert out.shape == ref.shape, (out.shape, ref.shape)
    assert jnp.array_equal(out, ref), "mismatch vs reference pad (H+W)"

    # 2) W-only padding (general path).
    out2 = jax.block_until_ready(simple_pad(x, (3, 5)))
    ref2 = jnp.pad(x, ((0, 0), (0, 0), (0, 0), (3, 5)))
    assert jnp.array_equal(out2, ref2), "mismatch vs reference pad (W-only)"

    # 3) H-only padding -> lane-dense flat fast path.
    out3 = jax.block_until_ready(simple_pad(x, (0, 0, 2, 1)))
    ref3 = jnp.pad(x, ((0, 0), (0, 0), (2, 1), (0, 0)))
    assert jnp.array_equal(out3, ref3), "mismatch vs reference pad (H-only)"

    # 4) Awkward channel count (B=13) -> ragged cdiv blocking, general path.
    key2 = jax.random.PRNGKey(1)
    y = jax.random.normal(key2, (1, 13, 16, 16), dtype=jnp.float32)
    out4 = jax.block_until_ready(simple_pad(y, (1, 1, 1, 1)))
    ref4 = jnp.pad(y, ((0, 0), (0, 0), (1, 1), (1, 1)))
    assert jnp.array_equal(out4, ref4), "mismatch vs reference pad (ragged 3D)"

    # 5) Awkward channel count on the flat fast path (ragged sublane blocks).
    out5 = jax.block_until_ready(simple_pad(y, (0, 0, 1, 2)))
    ref5 = jnp.pad(y, ((0, 0), (0, 0), (1, 2), (0, 0)))
    assert jnp.array_equal(out5, ref5), "mismatch vs reference pad (ragged flat)"

    print("KERNEL_OK")
</pallas_src>

<mosaic_0001>
module attributes {stable_mosaic.version = 11 : i64} {
  func.func @kernel(%arg0: i32, %arg1: memref<4x16x16xf32, #tpu.memory_space<vmem>>, %arg2: memref<4x23x19xf32, #tpu.memory_space<vmem>>) attributes {dimension_semantics = [#tpu.dimension_semantics<parallel>], iteration_bounds = array<i64: 2>, scalar_prefetch = 0 : i64, scratch_operands = 0 : i64, tpu.core_type = #tpu.core_type<tc>, window_params = [{transform_indices = @transform_0, window_bounds = array<i64: 4, 16, 16>}, {transform_indices = @transform_1, window_bounds = array<i64: 4, 23, 19>}]} {
    %cst = arith.constant 0.000000e+00 : f32
    %0 = vector.broadcast %cst : f32 to vector<4x3x19xf32>
    %c0 = arith.constant 0 : index
    %c0_0 = arith.constant 0 : index
    %c0_1 = arith.constant 0 : index
    %1 = vector.load %arg2[%c0, %c0_0, %c0_1] : memref<4x23x19xf32, #tpu.memory_space<vmem>>, vector<4x3x19xf32>
    tpu.vector_store %arg2[%c0, %c0_0, %c0_1], %0 {strides = array<i32>} : memref<4x23x19xf32, #tpu.memory_space<vmem>>, vector<4x3x19xf32>,
    %cst_2 = arith.constant 0.000000e+00 : f32
    %2 = vector.broadcast %cst_2 : f32 to vector<4x4x19xf32>
    %c0_3 = arith.constant 0 : index
    %c19 = arith.constant 19 : index
    %c0_4 = arith.constant 0 : index
    %3 = vector.load %arg2[%c0_3, %c19, %c0_4] : memref<4x23x19xf32, #tpu.memory_space<vmem>>, vector<4x4x19xf32>
    tpu.vector_store %arg2[%c0_3, %c19, %c0_4], %2 {strides = array<i32>} : memref<4x23x19xf32, #tpu.memory_space<vmem>>, vector<4x4x19xf32>,
    %cst_5 = arith.constant 0.000000e+00 : f32
    %4 = vector.broadcast %cst_5 : f32 to vector<4x16x1xf32>
    %c0_6 = arith.constant 0 : index
    %c3 = arith.constant 3 : index
    %c0_7 = arith.constant 0 : index
    %5 = vector.load %arg2[%c0_6, %c3, %c0_7] : memref<4x23x19xf32, #tpu.memory_space<vmem>>, vector<4x16x1xf32>
    tpu.vector_store %arg2[%c0_6, %c3, %c0_7], %4 {strides = array<i32>} : memref<4x23x19xf32, #tpu.memory_space<vmem>>, vector<4x16x1xf32>,
    %cst_8 = arith.constant 0.000000e+00 : f32
    %6 = vector.broadcast %cst_8 : f32 to vector<4x16x2xf32>
    %c0_9 = arith.constant 0 : index
    %c3_10 = arith.constant 3 : index
    %c17 = arith.constant 17 : index
    %7 = vector.load %arg2[%c0_9, %c3_10, %c17] : memref<4x23x19xf32, #tpu.memory_space<vmem>>, vector<4x16x2xf32>
    tpu.vector_store %arg2[%c0_9, %c3_10, %c17], %6 {strides = array<i32>} : memref<4x23x19xf32, #tpu.memory_space<vmem>>, vector<4x16x2xf32>,
    %c0_11 = arith.constant 0 : index
    %c0_12 = arith.constant 0 : index
    %c0_13 = arith.constant 0 : index
    %8 = vector.load %arg1[%c0_11, %c0_12, %c0_13] : memref<4x16x16xf32, #tpu.memory_space<vmem>>, vector<4x16x16xf32>
    %c0_14 = arith.constant 0 : index
    %c3_15 = arith.constant 3 : index
    %c1 = arith.constant 1 : index
    %9 = vector.load %arg2[%c0_14, %c3_15, %c1] : memref<4x23x19xf32, #tpu.memory_space<vmem>>, vector<4x16x16xf32>
    tpu.vector_store %arg2[%c0_14, %c3_15, %c1], %8 {strides = array<i32>} : memref<4x23x19xf32, #tpu.memory_space<vmem>>, vector<4x16x16xf32>,
    return
  }
  func.func @transform_0(%arg0: i32) -> (i32, i32, i32) {
    %c0_i32 = arith.constant 0 : i32
    %c0_i32_0 = arith.constant 0 : i32
    %c0_i32_1 = arith.constant 0 : i32
    return %arg0, %c0_i32, %c0_i32_0 : i32, i32, i32
  }
  func.func @transform_1(%arg0: i32) -> (i32, i32, i32) {
    %c0_i32 = arith.constant 0 : i32
    %c0_i32_0 = arith.constant 0 : i32
    %c0_i32_1 = arith.constant 0 : i32
    return %arg0, %c0_i32, %c0_i32_0 : i32, i32, i32
  }
}

</mosaic_0001>

<llo_original>
// kernel: tpu_custom_call.1
$region0: #{tpu_custom_call.1}
  #allocation0 [shape = 'u32[]', space=smem, size = 0x4, offset = 0x4, fixed_abs, tag = 'smem constant byte address 0x4 - core index']
  #allocation1 [shape = 'u32[144,128]{1,0:T(1,128)}', space=vmem, size = 0x12000, scoped, tag = 'internal scratch']
  %s0 = inlined_call_operand.hbm [shape: f32[8,16,16], index: 0, kind: input, shape index: {}]
  %s1 = inlined_call_operand.vmem [shape: f32[8,23,19], index: 1, kind: output, shape index: {}]
  %s2 = sld [smem:[#allocation0]]
  $region41: #{tpu_custom_call.1} parent=0
    _
  %s4 = ssub.s32 1, %s2
  %s5 = scalar_select 0, %s4, %s2
  $region1: #{tpu_custom_call.1} parent=0
    #allocation2 [shape = 'u8[65536]{0}', space=vmem, size = 0x10000, scoped, tag = 'input window, operand 0']
    #allocation3 [shape = 's32[2]{0}', space=sflag, size = 0x8, scoped, tag = 'scoped memory for tpu_custom_call.1']
    %6 = vsyncpa [#allocation3], 0
    %s7 = scalar_lea.sflag [#allocation3], 1
    %8 = vsyncpa %s7, 0
    loop: start=0, step=1, limit=4
    $region2: #{tpu_custom_call.1} parent=1 // loop_pre_header
      _
    $region3: #{tpu_custom_call.1} parent=1 // loop_header
      %s10 = sphi 0, %s14
      %p11 = scmp.ge.s32.totalorder %s10, 4
      %s20 = sphi 0, %s22
      %s23 = sphi 0, %s20
      %s24 = sphi 0, %s23
      %s40 = sphi 0, %s24
      %s46 = sphi 0, %s48
      %s49 = sphi 0, %s46
      %s50 = sphi 0, %s49
      %s66 = sphi 0, %s50
    $region4: #{tpu_custom_call.1} parent=1 // loop_header_branch
      %13 = sbr.rel (%p11) target = $region8
    $region5: #{tpu_custom_call.1} parent=1 // loop_body
      %s15 = ssub.s32 %s10, 1
      %s16 = ssub.s32 %s10, 2
      %s17 = sadd.s32 %s10, 1
      %s18 = ssub.s32 %s10, %s17
      %p19 = scmp.eq.s32.totalorder %s18, 0
      %s21 = sadd.s32 %s20, 1
      %s22 = scalar_select %p19, %s20, %s21
      %p25 = pneg %p19
      %p26 = scmp.eq.s32.totalorder %s10, 1
      %p27 = por %p25, %p26
      %p28 = scmp.ne.s32.totalorder %s20, %s23
      %p29 = scmp.eq.s32.totalorder %s10, 0
      %p30 = por %p28, %p29
      %p31 = scmp.ne.s32.totalorder %s20, %s23
      %p32 = scmp.eq.s32.totalorder %s15, 1
      %p33 = por %p31, %p32
      %p34 = scmp.ne.s32.totalorder %s23, %s24
      %p35 = scmp.eq.s32.totalorder %s15, 0
      %p36 = por %p34, %p35
      %p37 = scmp.ne.s32.totalorder %s23, %s24
      %p38 = scmp.eq.s32.totalorder %s16, 1
      %p39 = por %p37, %p38
      %p41 = scmp.ne.s32.totalorder %s24, %s40
      %p42 = scmp.eq.s32.totalorder %s16, 0
      %p43 = por %p41, %p42
      %s44 = ssub.s32 %s10, %s17
      %p45 = scmp.eq.s32.totalorder %s44, 0
      %s47 = sadd.s32 %s46, 1
      %s48 = scalar_select %p45, %s46, %s47
      %p51 = pneg %p45
      %p52 = scmp.eq.s32.totalorder %s10, 1
      %p53 = por %p51, %p52
      %p54 = scmp.ne.s32.totalorder %s46, %s49
      %p55 = scmp.eq.s32.totalorder %s10, 0
      %p56 = por %p54, %p55
      %p57 = scmp.ne.s32.totalorder %s46, %s49
      %p58 = scmp.eq.s32.totalorder %s15, 1
      %p59 = por %p57, %p58
      %p60 = scmp.ne.s32.totalorder %s49, %s50
      %p61 = scmp.eq.s32.totalorder %s15, 0
      %p62 = por %p60, %p61
      %p63 = scmp.ne.s32.totalorder %s49, %s50
      %p64 = scmp.eq.s32.totalorder %s16, 1
      %p65 = por %p63, %p64
      %p67 = scmp.ne.s32.totalorder %s50, %s66
      %p68 = scmp.eq.s32.totalorder %s16, 0
      %p69 = por %p67, %p68
      %p70 = scmp.le.s32.totalorder 1, %s10
      %p71 = scmp.lt.s32.totalorder %s10, 3
      %p72 = pnand %p70, %p71
      %p73 = pneg %p72
      // Predicated region
      $region9: #{tpu_custom_call.1} parent=5 // pred_check
        _
      $region10: #{tpu_custom_call.1} parent=5 // pred_check_branch
        %75 = sbr.rel (%p72) target = $region12
      $region11: #{tpu_custom_call.1} parent=5 // pred_region
        %s76 = ssub.s32 %s10, 1
      $region12: #{tpu_custom_call.1} parent=5 // pred_fallthru
        _
      %p77 = scmp.lt.s32.totalorder %s10, 2
      // Predicated region
      $region13: #{tpu_custom_call.1} parent=5 // pred_check
        %p78 = pneg %p77
      $region14: #{tpu_custom_call.1} parent=5 // pred_check_branch
        %80 = sbr.rel (%p78) target = $region16
      $region15: #{tpu_custom_call.1} parent=5 // pred_region
        // Predicated region
        $region17: #{tpu_custom_call.1} parent=15 // pred_check
          %p81 = pneg %p30
        $region18: #{tpu_custom_call.1} parent=15 // pred_check_branch
          %83 = sbr.rel (%p81) target = $region20
        $region19: #{tpu_custom_call.1} parent=15 // pred_region
          %s84 = sand.u32 %s20, 1
          %s85 = scalar_lea.sflag [#allocation3], %s84
          %s86 = sand.u32 %s20, 1
          %s87 = smul.addr %s86, 64
          %s88 = scalar_lea.vmem [#allocation2], %s87
          %s89 = smul.u32 4, %s10
          %s91 = ssub.s32 1024, 1024
          %92 = vsyncadd %s85, %s91
          %s93 = smul.addr %s89, 2
          %s94 = smul.addr %s93, 128
          %s95 = scalar_lea.hbm %s0, %s94
          %s96 = sshll.u32 %s88, 4
          %s97 = int_to_ptr.vmem [resolvable:$true] %s96
          %102 = dma.hbm_to_vmem [thread:$0]  %s95, 1024, %s97, %s85, 128, 128, 8
        $region20: #{tpu_custom_call.1} parent=15 // pred_fallthru
          _
      $region16: #{tpu_custom_call.1} parent=5 // pred_fallthru
        _
      %p103 = scmp.le.s32.totalorder 1, %s10
      %p104 = scmp.lt.s32.totalorder %s10, 3
      %p105 = pnand %p103, %p104
      %p106 = pneg %p105
      // Predicated region
      $region21: #{tpu_custom_call.1} parent=5 // pred_check
        _
      $region22: #{tpu_custom_call.1} parent=5 // pred_check_branch
        %108 = sbr.rel (%p105) target = $region24
      $region23: #{tpu_custom_call.1} parent=5 // pred_region
        %s109 = ssub.s32 %s10, 1
        %s110 = sand.u32 %s23, 1
        %s111 = scalar_lea.sflag [#allocation3], %s110
        %s112 = sand.u32 %s23, 1
        %s113 = smul.addr %s112, 64
        %s114 = scalar_lea.vmem [#allocation2], %s113
        // Predicated region
        $region25: #{tpu_custom_call.1} parent=23 // pred_check
          %p115 = pneg %p36
        $region26: #{tpu_custom_call.1} parent=23 // pred_check_branch
          %117 = sbr.rel (%p115) target = $region28
        $region27: #{tpu_custom_call.1} parent=23 // pred_region
          %118 = dma.done %s111, 1024
        $region28: #{tpu_custom_call.1} parent=23 // pred_fallthru
          _
        %s119 = sand.u32 %s23, 1
        %s120 = scalar_lea.sflag [#allocation3], %s119
        %s121 = sand.u32 %s23, 1
        %s122 = smul.addr %s121, 64
        %s123 = scalar_lea.vmem [#allocation2], %s122
        %p124 = pneg %p36
        %p125 = pneg %p33
        %p126 = pneg %p62
        %p127 = pneg %p59
        %s128 = smul.u32 4, %s15
        %p129 = scmp.lt.s32.totalorder %s128, 7
        %s130 = scalar_select %p129, %s128, 7
        %s131 = smul.addr %s130, 3
        %s132 = smul.addr %s131, 8
        %s133 = scalar_lea.vmem %s1, %s132
        %s134 = smul.u32 4, %s15
        %s135 = smul.u32 4, %s15
        %p136 = scmp.lt.s32.totalorder %s135, 7
        %s137 = scalar_select %p136, %s135, 7
        %s138 = smul.addr %s137, 3
        %s139 = smul.addr %s138, 8
        %s140 = scalar_lea.vmem %s1, %s139
        %s141 = smul.u32 4, %s15
        %vm142 = vcmask 149504
        %143 = vst.msk [vmem:[%s140] sm:$0x7] %vm142, 0.0
        %144 = vst.msk [vmem:[%s140 + $0x18] sm:$0x7] %vm142, 0.0
        %145 = vst.msk [vmem:[%s140 + $0x30] sm:$0x7] %vm142, 0.0
        %146 = vst.msk [vmem:[%s140 + $0x48] sm:$0x7] %vm142, 0.0
        %vm147 = vcmask 150528
        %148 = vst.msk [vmem:[%s140 + $0x13] sm:$0xf] %vm147, 0.0
        %149 = vst.msk [vmem:[%s140 + $0x2b] sm:$0xf] %vm147, 0.0
        %150 = vst.msk [vmem:[%s140 + $0x43] sm:$0xf] %vm147, 0.0
        %151 = vst.msk [vmem:[%s140 + $0x5b] sm:$0xf] %vm147, 0.0
        %vm152 = vcmask 7168
        %153 = vst.msk [vmem:[%s140 + $0x3] sm:$0xff] %vm152, 0.0
        %154 = vst.msk [vmem:[%s140 + $0xb] sm:$0xff] %vm152, 0.0
        %155 = vst.msk [vmem:[%s140 + $0x1b] sm:$0xff] %vm152, 0.0
        %156 = vst.msk [vmem:[%s140 + $0x23] sm:$0xff] %vm152, 0.0
        %157 = vst.msk [vmem:[%s140 + $0x33] sm:$0xff] %vm152, 0.0
        %158 = vst.msk [vmem:[%s140 + $0x3b] sm:$0xff] %vm152, 0.0
        %159 = vst.msk [vmem:[%s140 + $0x4b] sm:$0xff] %vm152, 0.0
        %160 = vst.msk [vmem:[%s140 + $0x53] sm:$0xff] %vm152, 0.0
        %vm161 = vcmask 154760
        %162 = vst.msk [vmem:[%s140 + $0x3] sm:$0xff] %vm161, 0.0
        %163 = vst.msk [vmem:[%s140 + $0xb] sm:$0xff] %vm161, 0.0
        %164 = vst.msk [vmem:[%s140 + $0x1b] sm:$0xff] %vm161, 0.0
        %165 = vst.msk [vmem:[%s140 + $0x23] sm:$0xff] %vm161, 0.0
        %166 = vst.msk [vmem:[%s140 + $0x33] sm:$0xff] %vm161, 0.0
        %167 = vst.msk [vmem:[%s140 + $0x3b] sm:$0xff] %vm161, 0.0
        %168 = vst.msk [vmem:[%s140 + $0x4b] sm:$0xff] %vm161, 0.0
        %169 = vst.msk [vmem:[%s140 + $0x53] sm:$0xff] %vm161, 0.0
        %v170 = vld [vmem:[%s114] sm:$0xff]
        %v171 = vld [vmem:[%s114 + $0x8] sm:$0xff]
        %v172 = vld [vmem:[%s114 + $0x10] sm:$0xff]
        %v173 = vld [vmem:[%s114 + $0x18] sm:$0xff]
        %v174 = vld [vmem:[%s114 + $0x20] sm:$0xff]
        %v175 = vld [vmem:[%s114 + $0x28] sm:$0xff]
        %v176 = vld [vmem:[%s114 + $0x30] sm:$0xff]
        %v177 = vld [vmem:[%s114 + $0x38] sm:$0xff]
        %186 = vrot.lane.b32.xlu0 %v170, 1
        %v187 = vpop.permute.xlu0 %186
        %188 = vrot.lane.b32.xlu0 %v171, 1
        %v189 = vpop.permute.xlu0 %188
        %190 = vrot.lane.b32.xlu0 %v172, 1
        %v191 = vpop.permute.xlu0 %190
        %192 = vrot.lane.b32.xlu0 %v173, 1
        %v193 = vpop.permute.xlu0 %192
        %194 = vrot.lane.b32.xlu0 %v174, 1
        %v195 = vpop.permute.xlu0 %194
        %196 = vrot.lane.b32.xlu0 %v175, 1
        %v197 = vpop.permute.xlu0 %196
        %198 = vrot.lane.b32.xlu0 %v176, 1
        %v199 = vpop.permute.xlu0 %198
        %200 = vrot.lane.b32.xlu0 %v177, 1
        %v201 = vpop.permute.xlu0 %200
        %vm210 = vcmask 138248
        %211 = vst.msk [vmem:[%s140 + $0x3] sm:$0xff] %vm210, %v187
        %212 = vst.msk [vmem:[%s140 + $0xb] sm:$0xff] %vm210, %v189
        %213 = vst.msk [vmem:[%s140 + $0x1b] sm:$0xff] %vm210, %v191
        %214 = vst.msk [vmem:[%s140 + $0x23] sm:$0xff] %vm210, %v193
        %215 = vst.msk [vmem:[%s140 + $0x33] sm:$0xff] %vm210, %v195
        %216 = vst.msk [vmem:[%s140 + $0x3b] sm:$0xff] %vm210, %v197
        %217 = vst.msk [vmem:[%s140 + $0x4b] sm:$0xff] %vm210, %v199
        %218 = vst.msk [vmem:[%s140 + $0x53] sm:$0xff] %vm210, %v201
        %s219 = smul.u32 4, %s15
        %p220 = scmp.lt.s32.totalorder %s219, 7
        %s221 = scalar_select %p220, %s219, 7
        %s222 = smul.addr %s221, 3
        %s223 = smul.addr %s222, 8
        %s224 = scalar_lea.vmem %s1, %s223
        // Predicated region
        $region29: #{tpu_custom_call.1} parent=23 // pred_check
          %p225 = pneg %p59
        $region30: #{tpu_custom_call.1} parent=23 // pred_check_branch
          %227 = sbr.rel (%p225) target = $region32
        $region31: #{tpu_custom_call.1} parent=23 // pred_region
          %s228 = smul.u32 4, %s15
        $region32: #{tpu_custom_call.1} parent=23 // pred_fallthru
          _
      $region24: #{tpu_custom_call.1} parent=5 // pred_fallthru
        _
      %p229 = scmp.le.s32.totalorder 2, %s10
      // Predicated region
      $region33: #{tpu_custom_call.1} parent=5 // pred_check
        %p230 = pneg %p229
      $region34: #{tpu_custom_call.1} parent=5 // pred_check_branch
        %232 = sbr.rel (%p230) target = $region36
      $region35: #{tpu_custom_call.1} parent=5 // pred_region
        %s233 = ssub.s32 %s10, 2
        // Predicated region
        $region37: #{tpu_custom_call.1} parent=35 // pred_check
          %p234 = pneg %p65
        $region38: #{tpu_custom_call.1} parent=35 // pred_check_branch
          %236 = sbr.rel (%p234) target = $region40
        $region39: #{tpu_custom_call.1} parent=35 // pred_region
          %s237 = smul.u32 4, %s16
          %p238 = scmp.lt.s32.totalorder %s237, 7
          %s239 = scalar_select %p238, %s237, 7
          %s240 = smul.addr %s239, 3
          %s241 = smul.addr %s240, 8
          %s242 = scalar_lea.vmem %s1, %s241
        $region40: #{tpu_custom_call.1} parent=35 // pred_fallthru
          _
      $region36: #{tpu_custom_call.1} parent=5 // pred_fallthru
        _
    $region6: #{tpu_custom_call.1} parent=1 // loop_footer
      %s14 = sadd.s32 1, %s10
    $region7: #{tpu_custom_call.1} parent=1 // loop_footer_branch
      %9 = sbr.rel target = $region3
    $region8: #{tpu_custom_call.1} parent=1 // loop_exit
      _
    %243 = vsyncpa [#allocation3], 1
    %s244 = scalar_lea.sflag [#allocation3], 1
    %245 = vsyncpa %s244, 1

</llo_original>
